<compile_context>
chip_gen: v7x
topology: tpu7x:2x2x1
jax: 0.10.0
libtpu: 0.0.40
codegen_flags: <defaults>
</compile_context>

<pallas_src>
import functools

import jax
import jax.numpy as jnp
from jax.experimental import pallas as pl
from jax.experimental.pallas import tpu as pltpu

BN_EPS = 1e-5


# ---------------------------------------------------------------------------
# Kernel
# ---------------------------------------------------------------------------
def _encoder_kernel(n_hidden, *refs):
    """Fused dual-branch MLP: n_hidden x (Linear -> BN(train) -> ReLU) -> Linear.

    refs = (x, W_0, gb_0, ..., W_{n-1}, gb_{n-1}, W_f, b_f, out)
      W_l : [in_l, 2*h_l]   fused weights (layer 0 lane-concat, later block-diag)
      gb_l: [2, 2*h_l]      row 0 = gamma, row 1 = beta (lane-fused)
      W_f : [2*h_last, 2*(latent-1)]  block-diag final head weights
      b_f : [1, 2*(latent-1)]         fused final biases
      out : [B, 2*(latent-1)]         (mean || log_var)
    """
    x_ref = refs[0]
    out_ref = refs[-1]

    h = x_ref[...]
    for l in range(n_hidden):
        w = refs[1 + 2 * l][...]       # [in_l, 2*h_l]
        gb = refs[2 + 2 * l][...]      # [2, 2*h_l]
        # Hidden Linear bias omitted: it cancels exactly in (z - batch_mean).
        z = jnp.dot(h, w, preferred_element_type=jnp.float32)
        mu = jnp.mean(z, axis=0, keepdims=True)
        diff = z - mu
        var = jnp.mean(diff * diff, axis=0, keepdims=True)   # biased batch var
        # Fold BN normalize + affine into one scale/shift on [1, 2*h].
        s = gb[0:1, :] * jax.lax.rsqrt(var + BN_EPS)          # rsqrt -> EUP slot
        t = gb[1:2, :] - mu * s
        h = jnp.maximum(z * s + t, 0.0)

    wf = refs[1 + 2 * n_hidden][...]   # [2*h_last, 2*(latent-1)]
    bf = refs[2 + 2 * n_hidden][...]   # [1, 2*(latent-1)]
    out_ref[...] = jnp.dot(h, wf, preferred_element_type=jnp.float32) + bf


# ---------------------------------------------------------------------------
# Parameter construction & packing
# ---------------------------------------------------------------------------
def init_encoder_params(key, input_dim, latent_dim, hidden_dims):
    """Deterministic parameter init, PyTorch-like layout. Weights as [in, out]."""
    def linear(k, d_in, d_out):
        kw, kb = jax.random.split(k)
        w = jax.random.normal(kw, (d_in, d_out), jnp.float32) * 0.1
        b = jax.random.normal(kb, (1, d_out), jnp.float32) * 0.01
        return w, b

    params = {"mean": [], "var": []}
    for branch in ("mean", "var"):
        prev = input_dim
        for h in hidden_dims:
            key, k1 = jax.random.split(key)
            w, b = linear(k1, prev, h)
            gamma = jnp.ones((1, h), jnp.float32)
            beta = jnp.zeros((1, h), jnp.float32)
            params[branch].extend([w, b, gamma, beta])
            prev = h
        key, k2 = jax.random.split(key)
        wf, bf = linear(k2, prev, latent_dim - 1)
        params[branch].extend([wf, bf])
    return params


def _block_diag(a, b):
    r1, c1 = a.shape
    r2, c2 = b.shape
    top = jnp.concatenate([a, jnp.zeros((r1, c2), a.dtype)], axis=1)
    bot = jnp.concatenate([jnp.zeros((r2, c1), b.dtype), b], axis=1)
    return jnp.concatenate([top, bot], axis=0)


def pack_encoder_params(params, n_hidden):
    """Fuse mean/var branch params along the lane dim.

    Returns [W_0, gb_0, ..., W_{n-1}, gb_{n-1}, W_f, b_f].
    Hidden-layer Linear biases are intentionally dropped (cancel under BN).
    """
    mean_p, var_p = params["mean"], params["var"]
    packed = []
    for l in range(n_hidden):
        wm, _, gm, bm = mean_p[4 * l:4 * l + 4]
        wv, _, gv, bv = var_p[4 * l:4 * l + 4]
        w = jnp.concatenate([wm, wv], axis=1) if l == 0 else _block_diag(wm, wv)
        gamma = jnp.concatenate([gm, gv], axis=1)
        beta = jnp.concatenate([bm, bv], axis=1)
        packed += [w, jnp.concatenate([gamma, beta], axis=0)]
    wmf, bmf = mean_p[4 * n_hidden:4 * n_hidden + 2]
    wvf, bvf = var_p[4 * n_hidden:4 * n_hidden + 2]
    packed += [_block_diag(wmf, wvf), jnp.concatenate([bmf, bvf], axis=1)]
    return packed


# ---------------------------------------------------------------------------
# Wrapper
# ---------------------------------------------------------------------------
def encoder_forward(x, params, n_hidden):
    B = x.shape[0]
    latent_m1 = params["mean"][-1].shape[1]
    inputs = [x] + pack_encoder_params(params, n_hidden)

    vmem = pl.BlockSpec(memory_space=pltpu.MemorySpace.VMEM)
    kernel = functools.partial(_encoder_kernel, n_hidden)

    out = pl.pallas_call(
        kernel,
        out_shape=jax.ShapeDtypeStruct((B, 2 * latent_m1), jnp.float32),
        in_specs=[vmem] * len(inputs),
        out_specs=vmem,
    )(*inputs)
    return out[:, :latent_m1], out[:, latent_m1:]


# ---------------------------------------------------------------------------
# Pure-JAX reference (mirrors the PyTorch forward in train mode, with biases)
# ---------------------------------------------------------------------------
def encoder_reference(x, params, n_hidden):
    def branch(x, refs):
        h = x
        for l in range(n_hidden):
            w, b, gamma, beta = refs[4 * l:4 * l + 4]
            z = h @ w + b
            mu = jnp.mean(z, axis=0, keepdims=True)
            var = jnp.mean((z - mu) ** 2, axis=0, keepdims=True)
            h = jax.nn.relu((z - mu) / jnp.sqrt(var + BN_EPS) * gamma + beta)
        return h @ refs[4 * n_hidden] + refs[4 * n_hidden + 1]
    return branch(x, params["mean"]), branch(x, params["var"])


if __name__ == "__main__":
    # Small shapes consistent with the module.
    B = 8
    input_dim = 32
    latent_dim = 9                       # latent heads output latent_dim - 1 = 8
    hidden_layers = {"l1": 32, "l2": 16}
    hidden_dims = list(hidden_layers.values())
    n_hidden = len(hidden_dims)

    key = jax.random.PRNGKey(0)
    kx, kp = jax.random.split(key)
    x = jax.random.normal(kx, (B, input_dim), jnp.float32)
    params = init_encoder_params(kp, input_dim, latent_dim, hidden_dims)

    mean, log_var = encoder_forward(x, params, n_hidden)
    jax.block_until_ready((mean, log_var))

    ref_mean, ref_logvar = encoder_reference(x, params, n_hidden)
    assert mean.shape == (B, latent_dim - 1) and log_var.shape == (B, latent_dim - 1)
    assert jnp.allclose(mean, ref_mean, atol=1e-4, rtol=1e-4)
    assert jnp.allclose(log_var, ref_logvar, atol=1e-4, rtol=1e-4)

    print("KERNEL_OK")
</pallas_src>

<mosaic_0001>
module attributes {stable_mosaic.version = 11 : i64} {
  func.func @_encoder_kernel(%arg0: memref<8x32xf32, #tpu.memory_space<vmem>>, %arg1: memref<32x64xf32, #tpu.memory_space<vmem>>, %arg2: memref<2x64xf32, #tpu.memory_space<vmem>>, %arg3: memref<64x32xf32, #tpu.memory_space<vmem>>, %arg4: memref<2x32xf32, #tpu.memory_space<vmem>>, %arg5: memref<32x16xf32, #tpu.memory_space<vmem>>, %arg6: memref<1x16xf32, #tpu.memory_space<vmem>>, %arg7: memref<8x16xf32, #tpu.memory_space<vmem>>) attributes {dimension_semantics = [], scalar_prefetch = 0 : i64, scratch_operands = 0 : i64, tpu.core_type = #tpu.core_type<tc>} {
    %c0 = arith.constant 0 : index
    %c0_0 = arith.constant 0 : index
    %0 = vector.load %arg0[%c0, %c0_0] : memref<8x32xf32, #tpu.memory_space<vmem>>, vector<8x32xf32>
    %c0_1 = arith.constant 0 : index
    %c0_2 = arith.constant 0 : index
    %1 = vector.load %arg1[%c0_1, %c0_2] : memref<32x64xf32, #tpu.memory_space<vmem>>, vector<32x64xf32>
    %c0_3 = arith.constant 0 : index
    %c0_4 = arith.constant 0 : index
    %2 = vector.load %arg2[%c0_3, %c0_4] : memref<2x64xf32, #tpu.memory_space<vmem>>, vector<2x64xf32>
    %cst = arith.constant dense<0.000000e+00> : vector<8x64xf32>
    %3 = tpu.matmul %0, %1, %cst {dimension_numbers = #tpu.dot_dimension_numbers<[1], [0], [0], [1], [0, 0, 1, 1], [], []>} : vector<8x32xf32>, vector<32x64xf32>, vector<8x64xf32> -> vector<8x64xf32>
    %cst_5 = arith.constant dense<0.000000e+00> : vector<64xf32>
    %4 = vector.multi_reduction <add>, %3, %cst_5 [0] : vector<8x64xf32> to vector<64xf32>
    %5 = vector.shape_cast %4 : vector<64xf32> to vector<1x64xf32>
    %cst_6 = arith.constant 8.000000e+00 : f32
    %6 = vector.broadcast %cst_6 : f32 to vector<1x64xf32>
    %7 = arith.divf %5, %6 : vector<1x64xf32>
    %8 = vector.broadcast %7 : vector<1x64xf32> to vector<8x64xf32>
    %9 = arith.subf %3, %8 : vector<8x64xf32>
    %10 = arith.mulf %9, %9 : vector<8x64xf32>
    %cst_7 = arith.constant dense<0.000000e+00> : vector<64xf32>
    %11 = vector.multi_reduction <add>, %10, %cst_7 [0] : vector<8x64xf32> to vector<64xf32>
    %12 = vector.shape_cast %11 : vector<64xf32> to vector<1x64xf32>
    %cst_8 = arith.constant 8.000000e+00 : f32
    %13 = vector.broadcast %cst_8 : f32 to vector<1x64xf32>
    %14 = arith.divf %12, %13 : vector<1x64xf32>
    %15 = vector.extract_strided_slice %2 {offsets = [0, 0], sizes = [1, 64], strides = [1, 1]} : vector<2x64xf32> to vector<1x64xf32>
    %cst_9 = arith.constant 9.99999974E-6 : f32
    %16 = vector.broadcast %cst_9 : f32 to vector<1x64xf32>
    %17 = arith.addf %14, %16 : vector<1x64xf32>
    %18 = math.rsqrt %17 : vector<1x64xf32>
    %19 = arith.mulf %15, %18 : vector<1x64xf32>
    %20 = vector.extract_strided_slice %2 {offsets = [1, 0], sizes = [1, 64], strides = [1, 1]} : vector<2x64xf32> to vector<1x64xf32>
    %21 = arith.mulf %7, %19 : vector<1x64xf32>
    %22 = arith.subf %20, %21 : vector<1x64xf32>
    %23 = vector.broadcast %19 : vector<1x64xf32> to vector<8x64xf32>
    %24 = arith.mulf %3, %23 : vector<8x64xf32>
    %25 = vector.broadcast %22 : vector<1x64xf32> to vector<8x64xf32>
    %26 = arith.addf %24, %25 : vector<8x64xf32>
    %cst_10 = arith.constant 0.000000e+00 : f32
    %27 = vector.broadcast %cst_10 : f32 to vector<8x64xf32>
    %28 = arith.maximumf %26, %27 : vector<8x64xf32>
    %c0_11 = arith.constant 0 : index
    %c0_12 = arith.constant 0 : index
    %29 = vector.load %arg3[%c0_11, %c0_12] : memref<64x32xf32, #tpu.memory_space<vmem>>, vector<64x32xf32>
    %c0_13 = arith.constant 0 : index
    %c0_14 = arith.constant 0 : index
    %30 = vector.load %arg4[%c0_13, %c0_14] : memref<2x32xf32, #tpu.memory_space<vmem>>, vector<2x32xf32>
    %cst_15 = arith.constant dense<0.000000e+00> : vector<8x32xf32>
    %31 = tpu.matmul %28, %29, %cst_15 {dimension_numbers = #tpu.dot_dimension_numbers<[1], [0], [0], [1], [0, 0, 1, 1], [], []>} : vector<8x64xf32>, vector<64x32xf32>, vector<8x32xf32> -> vector<8x32xf32>
    %cst_16 = arith.constant dense<0.000000e+00> : vector<32xf32>
    %32 = vector.multi_reduction <add>, %31, %cst_16 [0] : vector<8x32xf32> to vector<32xf32>
    %33 = vector.shape_cast %32 : vector<32xf32> to vector<1x32xf32>
    %cst_17 = arith.constant 8.000000e+00 : f32
    %34 = vector.broadcast %cst_17 : f32 to vector<1x32xf32>
    %35 = arith.divf %33, %34 : vector<1x32xf32>
    %36 = vector.broadcast %35 : vector<1x32xf32> to vector<8x32xf32>
    %37 = arith.subf %31, %36 : vector<8x32xf32>
    %38 = arith.mulf %37, %37 : vector<8x32xf32>
    %cst_18 = arith.constant dense<0.000000e+00> : vector<32xf32>
    %39 = vector.multi_reduction <add>, %38, %cst_18 [0] : vector<8x32xf32> to vector<32xf32>
    %40 = vector.shape_cast %39 : vector<32xf32> to vector<1x32xf32>
    %cst_19 = arith.constant 8.000000e+00 : f32
    %41 = vector.broadcast %cst_19 : f32 to vector<1x32xf32>
    %42 = arith.divf %40, %41 : vector<1x32xf32>
    %43 = vector.extract_strided_slice %30 {offsets = [0, 0], sizes = [1, 32], strides = [1, 1]} : vector<2x32xf32> to vector<1x32xf32>
    %cst_20 = arith.constant 9.99999974E-6 : f32
    %44 = vector.broadcast %cst_20 : f32 to vector<1x32xf32>
    %45 = arith.addf %42, %44 : vector<1x32xf32>
    %46 = math.rsqrt %45 : vector<1x32xf32>
    %47 = arith.mulf %43, %46 : vector<1x32xf32>
    %48 = vector.extract_strided_slice %30 {offsets = [1, 0], sizes = [1, 32], strides = [1, 1]} : vector<2x32xf32> to vector<1x32xf32>
    %49 = arith.mulf %35, %47 : vector<1x32xf32>
    %50 = arith.subf %48, %49 : vector<1x32xf32>
    %51 = vector.broadcast %47 : vector<1x32xf32> to vector<8x32xf32>
    %52 = arith.mulf %31, %51 : vector<8x32xf32>
    %53 = vector.broadcast %50 : vector<1x32xf32> to vector<8x32xf32>
    %54 = arith.addf %52, %53 : vector<8x32xf32>
    %cst_21 = arith.constant 0.000000e+00 : f32
    %55 = vector.broadcast %cst_21 : f32 to vector<8x32xf32>
    %56 = arith.maximumf %54, %55 : vector<8x32xf32>
    %c0_22 = arith.constant 0 : index
    %c0_23 = arith.constant 0 : index
    %57 = vector.load %arg5[%c0_22, %c0_23] : memref<32x16xf32, #tpu.memory_space<vmem>>, vector<32x16xf32>
    %c0_24 = arith.constant 0 : index
    %c0_25 = arith.constant 0 : index
    %58 = vector.load %arg6[%c0_24, %c0_25] : memref<1x16xf32, #tpu.memory_space<vmem>>, vector<1x16xf32>
    %cst_26 = arith.constant dense<0.000000e+00> : vector<8x16xf32>
    %59 = tpu.matmul %56, %57, %cst_26 {dimension_numbers = #tpu.dot_dimension_numbers<[1], [0], [0], [1], [0, 0, 1, 1], [], []>} : vector<8x32xf32>, vector<32x16xf32>, vector<8x16xf32> -> vector<8x16xf32>
    %60 = vector.broadcast %58 : vector<1x16xf32> to vector<8x16xf32>
    %61 = arith.addf %59, %60 : vector<8x16xf32>
    %c0_27 = arith.constant 0 : index
    %c0_28 = arith.constant 0 : index
    %62 = vector.load %arg7[%c0_27, %c0_28] : memref<8x16xf32, #tpu.memory_space<vmem>>, vector<8x16xf32>
    tpu.vector_store %arg7[%c0_27, %c0_28], %61 {strides = array<i32>} : memref<8x16xf32, #tpu.memory_space<vmem>>, vector<8x16xf32>,
    return
  }
}

</mosaic_0001>

<llo_original>
// kernel: tpu_custom_call.1
$region0: #{tpu_custom_call.1}
  #allocation0 [shape = 'u32[]', space=smem, size = 0x4, offset = 0x4, fixed_abs, tag = 'smem constant byte address 0x4 - core index']
  #allocation1 [shape = 'u32[144,128]{1,0:T(1,128)}', space=vmem, size = 0x12000, scoped, tag = 'internal scratch']
  %s0 = inlined_call_operand.vmem [shape: f32[8,32], index: 0, kind: input, shape index: {}]
  %s1 = inlined_call_operand.vmem [shape: f32[32,64], index: 1, kind: input, shape index: {}]
  %s2 = inlined_call_operand.vmem [shape: f32[2,64], index: 2, kind: input, shape index: {}]
  %s3 = inlined_call_operand.vmem [shape: f32[64,32], index: 3, kind: input, shape index: {}]
  %s4 = inlined_call_operand.vmem [shape: f32[2,32], index: 4, kind: input, shape index: {}]
  %s5 = inlined_call_operand.vmem [shape: f32[32,16], index: 5, kind: input, shape index: {}]
  %s6 = inlined_call_operand.vmem [shape: f32[1,16], index: 6, kind: input, shape index: {}]
  %s7 = inlined_call_operand.hbm [shape: f32[8,16], index: 7, kind: output, shape index: {}]
  %s8 = sld [smem:[#allocation0]]
  $region38: #{tpu_custom_call.1} parent=0
    _
  %s10 = ssub.s32 1, %s8
  %s11 = scalar_select 0, %s10, %s8
  $region1: #{tpu_custom_call.1} parent=0
    #allocation2 [shape = 'u8[4096]{0}', space=vmem, size = 0x1000, scoped, tag = 'output window, operand 0, single buffered']
    #allocation3 [shape = 's32[1]{0}', space=sflag, size = 0x4, scoped, tag = 'scoped memory for tpu_custom_call.1']
    %12 = vsyncpa [#allocation3], 0
    // Predicated region
    $region2: #{tpu_custom_call.1} parent=1 // pred_check
      _
    $region3: #{tpu_custom_call.1} parent=1 // pred_check_branch
      %14 = sbr.rel (0) target = $region5
    $region4: #{tpu_custom_call.1} parent=1 // pred_region
      _
    $region5: #{tpu_custom_call.1} parent=1 // pred_fallthru
      _
    // Predicated region
    $region6: #{tpu_custom_call.1} parent=1 // pred_check
      _
    $region7: #{tpu_custom_call.1} parent=1 // pred_check_branch
      %16 = sbr.rel (0) target = $region9
    $region8: #{tpu_custom_call.1} parent=1 // pred_region
      _
    $region9: #{tpu_custom_call.1} parent=1 // pred_fallthru
      _
    // Predicated region
    $region10: #{tpu_custom_call.1} parent=1 // pred_check
      _
    $region11: #{tpu_custom_call.1} parent=1 // pred_check_branch
      %18 = sbr.rel (0) target = $region13
    $region12: #{tpu_custom_call.1} parent=1 // pred_region
      _
    $region13: #{tpu_custom_call.1} parent=1 // pred_fallthru
      _
    // Predicated region
    $region14: #{tpu_custom_call.1} parent=1 // pred_check
      _
    $region15: #{tpu_custom_call.1} parent=1 // pred_check_branch
      %20 = sbr.rel (0) target = $region17
    $region16: #{tpu_custom_call.1} parent=1 // pred_region
      _
    $region17: #{tpu_custom_call.1} parent=1 // pred_fallthru
      _
    // Predicated region
    $region18: #{tpu_custom_call.1} parent=1 // pred_check
      _
    $region19: #{tpu_custom_call.1} parent=1 // pred_check_branch
      %22 = sbr.rel (0) target = $region21
    $region20: #{tpu_custom_call.1} parent=1 // pred_region
      _
    $region21: #{tpu_custom_call.1} parent=1 // pred_fallthru
      _
    // Predicated region
    $region22: #{tpu_custom_call.1} parent=1 // pred_check
      _
    $region23: #{tpu_custom_call.1} parent=1 // pred_check_branch
      %24 = sbr.rel (0) target = $region25
    $region24: #{tpu_custom_call.1} parent=1 // pred_region
      _
    $region25: #{tpu_custom_call.1} parent=1 // pred_fallthru
      _
    // Predicated region
    $region26: #{tpu_custom_call.1} parent=1 // pred_check
      _
    $region27: #{tpu_custom_call.1} parent=1 // pred_check_branch
      %26 = sbr.rel (0) target = $region29
    $region28: #{tpu_custom_call.1} parent=1 // pred_region
      _
    $region29: #{tpu_custom_call.1} parent=1 // pred_fallthru
      _
    %v27 = vld [vmem:[%s0] sm:$0xff]
    %v28 = vld [vmem:[%s1] sm:$0xff]
    %v29 = vld [vmem:[%s1 + $0x8] sm:$0xff]
    %v30 = vld [vmem:[%s1 + $0x10] sm:$0xff]
    %v31 = vld [vmem:[%s1 + $0x18] sm:$0xff]
    %v32 = vld [vmem:[%s2] sm:$0x3]
    %vm33 = vcmask 261120
    %v35 = vsel %vm33, %v27, 0
    %37 = vmatprep.subr.mxu0 0.0
    %38 = vmatpush1.msra.mxu0 %v28
    %39 = vmatprep.subr.mxu0 0.0
    %40 = vmatpush1.msra.mxu0 %v29
    %41 = vmatprep.subr.mxu0 0.0
    %42 = vmatpush1.msra.mxu0 %v30
    %43 = vmatprep.subr.mxu0 0.0
    %44 = vmatpush1.msra.mxu0 %v31
    %45 = vmatprep.subr.mxu0 0.0
    %46 = vmatpush1.msra.mxu0 0.0
    %47 = vmatprep.subr.mxu0 0.0
    %48 = vmatpush1.msra.mxu0 0.0
    %49 = vmatprep.subr.mxu0 0.0
    %50 = vmatpush1.msra.mxu0 0.0
    %51 = vmatprep.subr.mxu0 0.0
    %52 = vmatpush1.msra.mxu0 0.0
    %53 = vmatprep.subr.mxu0 0.0
    %54 = vmatpush1.msra.mxu0 0.0
    %55 = vmatprep.subr.mxu0 0.0
    %56 = vmatpush1.msra.mxu0 0.0
    %57 = vmatprep.subr.mxu0 0.0
    %58 = vmatpush1.msra.mxu0 0.0
    %59 = vmatprep.subr.mxu0 0.0
    %60 = vmatpush1.msra.mxu0 0.0
    %61 = vmatprep.subr.mxu0 0.0
    %62 = vmatpush1.msra.mxu0 0.0
    %63 = vmatprep.subr.mxu0 0.0
    %64 = vmatpush1.msra.mxu0 0.0
    %65 = vmatprep.subr.mxu0 0.0
    %66 = vmatpush1.msra.mxu0 0.0
    %67 = vmatprep.subr.mxu0 0.0
    %68 = vmatpush1.msra.mxu0 0.0
    %69 = vmatprep.subr.mxu0 0.0
    %70 = vmatpush1.msra.mxu0 0.0
    %71 = vmatprep.subr.mxu0 0.0
    %72 = vmatpush1.msra.mxu0 0.0
    %73 = vmatprep.subr.mxu0 0.0
    %74 = vmatpush1.msra.mxu0 0.0
    %75 = vmatprep.subr.mxu0 0.0
    %76 = vmatpush1.msra.mxu0 0.0
    %77 = vmatprep.subr.mxu0 0.0
    %78 = vmatpush1.msra.mxu0 0.0
    %79 = vmatprep.subr.mxu0 0.0
    %80 = vmatpush1.msra.mxu0 0.0
    %81 = vmatprep.subr.mxu0 0.0
    %82 = vmatpush1.msra.mxu0 0.0
    %83 = vmatprep.subr.mxu0 0.0
    %84 = vmatpush1.msra.mxu0 0.0
    %85 = vmatprep.subr.mxu0 0.0
    %86 = vmatpush1.msra.mxu0 0.0
    %87 = vmatprep.subr.mxu0 0.0
    %88 = vmatpush1.msra.mxu0 0.0
    %89 = vmatprep.subr.mxu0 0.0
    %90 = vmatpush1.msra.mxu0 0.0
    %91 = vmatprep.subr.mxu0 0.0
    %92 = vmatpush1.msra.mxu0 0.0
    %93 = vmatprep.subr.mxu0 0.0
    %94 = vmatpush1.msra.mxu0 0.0
    %95 = vmatprep.subr.mxu0 0.0
    %96 = vmatpush1.msra.mxu0 0.0
    %97 = vmatprep.subr.mxu0 0.0
    %98 = vmatpush1.msra.mxu0 0.0
    %99 = vmatprep.subr.mxu0 0.0
    %100 = vmatpush1.msra.mxu0 0.0
    %101 = vmatprep.mubr.f32.mxu0 0.0
    %102 = vmatmul.mubr.f32.gmra.mrb[0].mxu0 %v35
    %v103 = vpop.f32.mrb[0].mxu0
    %v104 = vadd.f32 0.0, %v103
    %v105 = vpop.f32.mrb[0].mxu0
    %106 = vdwg.mxu0
    %vm107 = vcmask 523264
    %v108 = vsel %vm107, %v104, 0.0
    %v109 = vrot.slane %v108, 4
    %v110 = vadd.f32 %v108, %v109
    %v111 = vrot.slane %v110, 2
    %v112 = vadd.f32 %v110, %v111
    %v113 = vrot.slane %v112, 1
    %v114 = vadd.f32 %v112, %v113
    %v115 = vrcp.pop 8.0
    %v116 = vmul.f32 %v114, %v115
    %v117 = vsub.f32 %v104, %v116
    %v118 = vmul.f32 %v117, %v117
    %v119 = vsel %vm107, %v118, 0.0
    %v120 = vrot.slane %v119, 4
    %v121 = vadd.f32 %v119, %v120
    %v122 = vrot.slane %v121, 2
    %v123 = vadd.f32 %v121, %v122
    %v124 = vrot.slane %v123, 1
    %v125 = vadd.f32 %v123, %v124
    %v126 = vmul.f32 %v125, %v115
    %v127 = vadd.f32 %v126, 1e-05
    %v128 = vrsqrt.pop %v127
    %v129 = vmul.f32 %v32, %v128
    %v130 = vmul.f32 %v116, %v129
    %v132 = vrot.slane %v130, 7
    %v134 = vsub.f32 %v32, %v132
    %v135 = vlaneseq
    %v136 = vshrl.u32 %v135, 7
    %v137 = vsub.s32 0, %v136
    %v138 = vrot.slane %v129, %v137
    %v139 = vmul.f32 %v104, %v138
    %v140 = vlaneseq
    %v141 = vshrl.u32 %v140, 7
    %v142 = vsub.s32 1, %v141
    %v143 = vrot.slane %v134, %v142
    %v144 = vadd.f32 %v139, %v143
    %v145 = vmax.f32 %v144, 0.0
    %v146 = vld [vmem:[%s3] sm:$0xff]
    %v147 = vld [vmem:[%s3 + $0x8] sm:$0xff]
    %v148 = vld [vmem:[%s3 + $0x10] sm:$0xff]
    %v149 = vld [vmem:[%s3 + $0x18] sm:$0xff]
    %v150 = vld [vmem:[%s3 + $0x20] sm:$0xff]
    %v151 = vld [vmem:[%s3 + $0x28] sm:$0xff]
    %v152 = vld [vmem:[%s3 + $0x30] sm:$0xff]
    %v153 = vld [vmem:[%s3 + $0x38] sm:$0xff]
    %v154 = vld [vmem:[%s4] sm:$0x3]
    %v156 = vsel %vm107, %v145, 0
    %158 = vmatprep.subr.mxu0 0.0
    %159 = vmatpush1.msra.mxu0 %v146
    %160 = vmatprep.subr.mxu0 0.0
    %161 = vmatpush1.msra.mxu0 %v147
    %162 = vmatprep.subr.mxu0 0.0
    %163 = vmatpush1.msra.mxu0 %v148
    %164 = vmatprep.subr.mxu0 0.0
    %165 = vmatpush1.msra.mxu0 %v149
    %166 = vmatprep.subr.mxu0 0.0
    %167 = vmatpush1.msra.mxu0 %v150
    %168 = vmatprep.subr.mxu0 0.0
    %169 = vmatpush1.msra.mxu0 %v151
    %170 = vmatprep.subr.mxu0 0.0
    %171 = vmatpush1.msra.mxu0 %v152
    %172 = vmatprep.subr.mxu0 0.0
    %173 = vmatpush1.msra.mxu0 %v153
    %174 = vmatprep.subr.mxu0 0.0
    %175 = vmatpush1.msra.mxu0 0.0
    %176 = vmatprep.subr.mxu0 0.0
    %177 = vmatpush1.msra.mxu0 0.0
    %178 = vmatprep.subr.mxu0 0.0
    %179 = vmatpush1.msra.mxu0 0.0
    %180 = vmatprep.subr.mxu0 0.0
    %181 = vmatpush1.msra.mxu0 0.0
    %182 = vmatprep.subr.mxu0 0.0
    %183 = vmatpush1.msra.mxu0 0.0
    %184 = vmatprep.subr.mxu0 0.0
    %185 = vmatpush1.msra.mxu0 0.0
    %186 = vmatprep.subr.mxu0 0.0
    %187 = vmatpush1.msra.mxu0 0.0
    %188 = vmatprep.subr.mxu0 0.0
    %189 = vmatpush1.msra.mxu0 0.0
    %190 = vmatprep.subr.mxu0 0.0
    %191 = vmatpush1.msra.mxu0 0.0
    %192 = vmatprep.subr.mxu0 0.0
    %193 = vmatpush1.msra.mxu0 0.0
    %194 = vmatprep.subr.mxu0 0.0
    %195 = vmatpush1.msra.mxu0 0.0
    %196 = vmatprep.subr.mxu0 0.0
    %197 = vmatpush1.msra.mxu0 0.0
    %198 = vmatprep.subr.mxu0 0.0
    %199 = vmatpush1.msra.mxu0 0.0
    %200 = vmatprep.subr.mxu0 0.0
    %201 = vmatpush1.msra.mxu0 0.0
    %202 = vmatprep.subr.mxu0 0.0
    %203 = vmatpush1.msra.mxu0 0.0
    %204 = vmatprep.subr.mxu0 0.0
    %205 = vmatpush1.msra.mxu0 0.0
    %206 = vmatprep.subr.mxu0 0.0
    %207 = vmatpush1.msra.mxu0 0.0
    %208 = vmatprep.subr.mxu0 0.0
    %209 = vmatpush1.msra.mxu0 0.0
    %210 = vmatprep.subr.mxu0 0.0
    %211 = vmatpush1.msra.mxu0 0.0
    %212 = vmatprep.subr.mxu0 0.0
    %213 = vmatpush1.msra.mxu0 0.0
    %214 = vmatprep.subr.mxu0 0.0
    %215 = vmatpush1.msra.mxu0 0.0
    %216 = vmatprep.subr.mxu0 0.0
    %217 = vmatpush1.msra.mxu0 0.0
    %218 = vmatprep.subr.mxu0 0.0
    %219 = vmatpush1.msra.mxu0 0.0
    %220 = vmatprep.subr.mxu0 0.0
    %221 = vmatpush1.msra.mxu0 0.0
    %222 = vmatprep.mubr.f32.mxu0 0.0
    %223 = vmatmul.mubr.f32.gmra.mrb[0].mxu0 %v156
    %v224 = vpop.f32.mrb[0].mxu0
    %v225 = vadd.f32 0.0, %v224
    %v226 = vpop.f32.mrb[0].mxu0
    %227 = vdwg.mxu0
    %v228 = vsel %vm33, %v225, 0.0
    %v229 = vrot.slane %v228, 4
    %v230 = vadd.f32 %v228, %v229
    %v231 = vrot.slane %v230, 2
    %v232 = vadd.f32 %v230, %v231
    %v233 = vrot.slane %v232, 1
    %v234 = vadd.f32 %v232, %v233
    %v235 = vmul.f32 %v234, %v115
    %v236 = vsub.f32 %v225, %v235
    %v237 = vmul.f32 %v236, %v236
    %v238 = vsel %vm33, %v237, 0.0
    %v239 = vrot.slane %v238, 4
    %v240 = vadd.f32 %v238, %v239
    %v241 = vrot.slane %v240, 2
    %v242 = vadd.f32 %v240, %v241
    %v243 = vrot.slane %v242, 1
    %v244 = vadd.f32 %v242, %v243
    %v245 = vmul.f32 %v244, %v115
    %v246 = vadd.f32 %v245, 1e-05
    %v247 = vrsqrt.pop %v246
    %v248 = vmul.f32 %v154, %v247
    %v249 = vmul.f32 %v235, %v248
    %v251 = vrot.slane %v249, 7
    %v253 = vsub.f32 %v154, %v251
    %v254 = vlaneseq
    %v255 = vshrl.u32 %v254, 7
    %v256 = vsub.s32 0, %v255
    %v257 = vrot.slane %v248, %v256
    %v258 = vmul.f32 %v225, %v257
    %v259 = vlaneseq
    %v260 = vshrl.u32 %v259, 7
    %v261 = vsub.s32 1, %v260
    %v262 = vrot.slane %v253, %v261
    %v263 = vadd.f32 %v258, %v262
    %v264 = vmax.f32 %v263, 0.0
    %v265 = vld [vmem:[%s5] sm:$0xff]
    %v266 = vld [vmem:[%s5 + $0x8] sm:$0xff]
    %v267 = vld [vmem:[%s5 + $0x10] sm:$0xff]
    %v268 = vld [vmem:[%s5 + $0x18] sm:$0xff]
    %v269 = vld [vmem:[%s6] sm:$0x1]
    %v271 = vlaneseq
    %v272 = vshrl.u32 %v271, 7
    %v273 = vsub.s32 0, %v272
    %v274 = vrot.slane %v269, %v273
    %v277 = vsel %vm33, %v264, 0
    %279 = vmatprep.subr.mxu0 0.0
    %280 = vmatpush1.msra.mxu0 %v265
    %281 = vmatprep.subr.mxu0 0.0
    %282 = vmatpush1.msra.mxu0 %v266
    %283 = vmatprep.subr.mxu0 0.0
    %284 = vmatpush1.msra.mxu0 %v267
    %285 = vmatprep.subr.mxu0 0.0
    %286 = vmatpush1.msra.mxu0 %v268
    %287 = vmatprep.subr.mxu0 0.0
    %288 = vmatpush1.msra.mxu0 0.0
    %289 = vmatprep.subr.mxu0 0.0
    %290 = vmatpush1.msra.mxu0 0.0
    %291 = vmatprep.subr.mxu0 0.0
    %292 = vmatpush1.msra.mxu0 0.0
    %293 = vmatprep.subr.mxu0 0.0
    %294 = vmatpush1.msra.mxu0 0.0
    %295 = vmatprep.subr.mxu0 0.0
    %296 = vmatpush1.msra.mxu0 0.0
    %297 = vmatprep.subr.mxu0 0.0
    %298 = vmatpush1.msra.mxu0 0.0
    %299 = vmatprep.subr.mxu0 0.0
    %300 = vmatpush1.msra.mxu0 0.0
    %301 = vmatprep.subr.mxu0 0.0
    %302 = vmatpush1.msra.mxu0 0.0
    %303 = vmatprep.subr.mxu0 0.0
    %304 = vmatpush1.msra.mxu0 0.0
    %305 = vmatprep.subr.mxu0 0.0
    %306 = vmatpush1.msra.mxu0 0.0
    %307 = vmatprep.subr.mxu0 0.0
    %308 = vmatpush1.msra.mxu0 0.0
    %309 = vmatprep.subr.mxu0 0.0
    %310 = vmatpush1.msra.mxu0 0.0
    %311 = vmatprep.subr.mxu0 0.0
    %312 = vmatpush1.msra.mxu0 0.0
    %313 = vmatprep.subr.mxu0 0.0
    %314 = vmatpush1.msra.mxu0 0.0
    %315 = vmatprep.subr.mxu0 0.0
    %316 = vmatpush1.msra.mxu0 0.0
    %317 = vmatprep.subr.mxu0 0.0
    %318 = vmatpush1.msra.mxu0 0.0
    %319 = vmatprep.subr.mxu0 0.0
    %320 = vmatpush1.msra.mxu0 0.0
    %321 = vmatprep.subr.mxu0 0.0
    %322 = vmatpush1.msra.mxu0 0.0
    %323 = vmatprep.subr.mxu0 0.0
    %324 = vmatpush1.msra.mxu0 0.0
    %325 = vmatprep.subr.mxu0 0.0
    %326 = vmatpush1.msra.mxu0 0.0
    %327 = vmatprep.subr.mxu0 0.0
    %328 = vmatpush1.msra.mxu0 0.0
    %329 = vmatprep.subr.mxu0 0.0
    %330 = vmatpush1.msra.mxu0 0.0
    %331 = vmatprep.subr.mxu0 0.0
    %332 = vmatpush1.msra.mxu0 0.0
    %333 = vmatprep.subr.mxu0 0.0
    %334 = vmatpush1.msra.mxu0 0.0
    %335 = vmatprep.subr.mxu0 0.0
    %336 = vmatpush1.msra.mxu0 0.0
    %337 = vmatprep.subr.mxu0 0.0
    %338 = vmatpush1.msra.mxu0 0.0
    %339 = vmatprep.subr.mxu0 0.0
    %340 = vmatpush1.msra.mxu0 0.0
    %341 = vmatprep.subr.mxu0 0.0
    %342 = vmatpush1.msra.mxu0 0.0
    %343 = vmatprep.mubr.f32.mxu0 0.0
    %344 = vmatmul.mubr.f32.gmra.mrb[0].mxu0 %v277
    %v345 = vpop.f32.mrb[0].mxu0
    %v346 = vadd.f32 %v274, %v345
    %v347 = vpop.f32.mrb[0].mxu0
    %348 = vdwg.mxu0
    %vm349 = vcmask 130048
    %350 = vst.msk [vmem:[#allocation2] sm:$0xff] %vm349, %v346
    // Predicated region
    $region30: #{tpu_custom_call.1} parent=1 // pred_check
      _
    $region31: #{tpu_custom_call.1} parent=1 // pred_check_branch
      %352 = sbr.rel (0) target = $region33
    $region32: #{tpu_custom_call.1} parent=1 // pred_region
      %s354 = ssub.s32 128, 128
      %355 = vsyncadd [#allocation3], %s354
      %s357 = sshll.u32 [#allocation2], 4
      %s358 = int_to_ptr.vmem [resolvable:$true] %s357
      %360 = dma.vmem_to_hbm [thread:$0]  %s358, 128, %s7, [#allocation3]
    $region33: #{tpu_custom_call.1} parent=1 // pred_fallthru
      _
    // Predicated region
    $region34: #{tpu_custom_call.1} parent=1 // pred_check
      _
    $region35: #{tpu_custom_call.1} parent=1 // pred_check_branch
      %362 = sbr.rel (0) target = $region37
    $region36: #{tpu_custom_call.1} parent=1 // pred_region
      %363 = dma.done [#allocation3], 128
    $region37: #{tpu_custom_call.1} parent=1 // pred_fallthru
      _
    %364 = vsyncpa [#allocation3], 1

</llo_original>
